<compile_context>
chip_gen: v5e
topology: v5e:2x2
jax: 0.10.0
libtpu: 0.0.40
codegen_flags: <defaults>
</compile_context>

<pallas_src>
import jax
import jax.numpy as jnp
from jax import lax
from jax.experimental import pallas as pl
from jax.experimental.pallas import tpu as pltpu


def _round_up(x: int, m: int) -> int:
    return (x + m - 1) // m * m


def _choose_tiles(T: int, block_rows: int, chunk_rows: int):
    """Pick (row tile, sub-chunk). tile % chunk == 0 and tile % 8 == 0."""
    block_rows = max(8, _round_up(block_rows, 8))
    chunk = max(8, min(_round_up(chunk_rows, 8), block_rows))
    t8 = _round_up(max(T, 1), 8)

    if t8 <= chunk:
        return t8, t8                          # one grid step, one chunk

    tile_cap = (block_rows // chunk) * chunk
    tm = min(tile_cap, _round_up(t8, chunk))
    # v7x: guarantee >=2 grid steps so the 'parallel' T axis can shard across
    # both TensorCores whenever there is enough work to split.
    if T >= 2 * chunk and pl.cdiv(T, tm) < 2:
        tm = _round_up(pl.cdiv(T, 2), chunk)
    return tm, chunk


def _make_kernel(actions: int, chunk: int, n_chunks: int):
    def kernel(s_ref, a_ref, w1s_ref, w1ab_ref, b1_ref, w2_ref, b2_ref, o_ref):
        # Tiny operands: load once per grid step, live in vregs across chunks.
        w1s = w1s_ref[...]                                    # [S, H]
        b1 = b1_ref[...]                                      # [1, H]
        w2 = w2_ref[...]                                      # [H, O]
        b2 = b2_ref[...]                                      # [1, O]
        act_rows = [w1ab_ref[pl.ds(j, 1), :] for j in range(actions)]  # A x [1, H]

        def chunk_body(c):
            off = c * chunk
            r0 = off if isinstance(off, int) else pl.multiple_of(off, chunk)
            s = s_ref[pl.ds(r0, chunk), :]                    # [C, S]  f32
            a = a_ref[pl.ds(r0, chunk), :].astype(jnp.int32)  # [C, 1]

            # First layer: s @ W1[:S] (MXU) + select(W1[S+a] + b1) (VPU).
            h = jnp.dot(s, w1s, preferred_element_type=jnp.float32)   # [C, H]
            act = b1                          # out-of-range actions -> bias only
            for j in range(actions):
                act = jnp.where(a == j, act_rows[j], act)             # -> [C, H]
            h = jnp.maximum(h + act, 0.0)                             # ReLU

            # Second layer (MXU) + bias.
            out = jnp.dot(h, w2, preferred_element_type=jnp.float32) + b2
            o_ref[pl.ds(r0, chunk), :] = out.astype(o_ref.dtype)      # [C, O]

        if n_chunks == 1:
            chunk_body(0)
        else:
            lax.fori_loop(0, n_chunks, lambda c, carry: chunk_body(c), None)

    return kernel


def one_hot_concat_sonet(s, a, w1, b1, w2, b2, actions: int, *,
                         block_rows: int = 2048, chunk_rows: int = 256):
    """s: [T, S] f32, a: [T, 1] int -> [T, O] f32.

    w1: [S + actions, H], b1: [H] or [1, H], w2: [H, O], b2: [O] or [1, O].
    """
    T, S = s.shape
    H = w1.shape[1]
    O = w2.shape[1]
    assert w1.shape[0] == S + actions
    assert a.shape == (T, 1)

    b1 = jnp.reshape(b1, (1, H)).astype(jnp.float32)
    b2 = jnp.reshape(b2, (1, O)).astype(jnp.float32)
    w1_state = w1[:S, :]                      # [S, H]
    w1_act_b1 = w1[S:, :] + b1                # [A, H]  (bias folded into action rows)
    a8 = a.astype(jnp.int8)                   # valid actions are small ints; 4x less VMEM

    tm, chunk = _choose_tiles(T, block_rows, chunk_rows)
    n_chunks = tm // chunk
    grid = (pl.cdiv(T, tm),)                  # trailing partial block handled by Pallas

    return pl.pallas_call(
        _make_kernel(actions, chunk, n_chunks),
        out_shape=jax.ShapeDtypeStruct((T, O), jnp.float32),
        grid=grid,
        in_specs=[
            pl.BlockSpec((tm, S), lambda i: (i, 0)),        # s: streamed over T
            pl.BlockSpec((tm, 1), lambda i: (i, 0)),        # a (int8): streamed over T
            pl.BlockSpec((S, H), lambda i: (0, 0)),         # W1[:S]: VMEM-resident
            pl.BlockSpec((actions, H), lambda i: (0, 0)),   # W1[S:] + b1: VMEM-resident
            pl.BlockSpec((1, H), lambda i: (0, 0)),         # b1: VMEM-resident
            pl.BlockSpec((H, O), lambda i: (0, 0)),         # W2: VMEM-resident
            pl.BlockSpec((1, O), lambda i: (0, 0)),         # b2: VMEM-resident
        ],
        out_specs=pl.BlockSpec((tm, O), lambda i: (i, 0)),
        compiler_params=pltpu.CompilerParams(
            dimension_semantics=("parallel",)),
    )(s, a8, w1_state, w1_act_b1, b1, w2, b2)


def _reference(s, a, w1, b1, w2, b2, actions):
    onehot = (a == jnp.arange(actions)[None, :]).astype(jnp.float32)
    sa = jnp.concatenate([s, onehot], axis=-1)
    h = jnp.maximum(sa @ w1 + b1, 0.0)
    return h @ w2 + b2


if __name__ == "__main__":
    S, A, H, O = 16, 4, 32, 8

    key = jax.random.PRNGKey(0)
    ks, ka, kw1, kb1, kw2, kb2 = jax.random.split(key, 6)

    # Deterministic "Linear"-style init (uniform +/- 1/sqrt(fan_in)).
    lim1 = 1.0 / jnp.sqrt(float(S + A))
    lim2 = 1.0 / jnp.sqrt(float(H))
    w1 = jax.random.uniform(kw1, (S + A, H), jnp.float32, -lim1, lim1)
    b1 = jax.random.uniform(kb1, (1, H), jnp.float32, -lim1, lim1)
    w2 = jax.random.uniform(kw2, (H, O), jnp.float32, -lim2, lim2)
    b2 = jax.random.uniform(kb2, (1, O), jnp.float32, -lim2, lim2)

    # 1) Small case: T = 8 (single grid step, single chunk).
    T = 8
    s = jax.random.normal(ks, (T, S), dtype=jnp.float32)
    a = jax.random.randint(ka, (T, 1), 0, A, dtype=jnp.int32)
    out = jax.block_until_ready(one_hot_concat_sonet(s, a, w1, b1, w2, b2, A))
    ref = _reference(s, a, w1, b1, w2, b2, A)
    assert out.shape == (T, O)
    assert jnp.allclose(out, ref, atol=1e-5, rtol=1e-5)

    # 2) Ragged multi-step case: T = 200 with 64-row tiles and 32-row chunks
    #    (exercises the partial trailing block, the inner chunk loop and the
    #    VMEM-resident weights across grid steps).
    T2 = 200
    ks2, ka2 = jax.random.split(ks)
    s2 = jax.random.normal(ks2, (T2, S), dtype=jnp.float32)
    a2 = jax.random.randint(ka2, (T2, 1), 0, A, dtype=jnp.int32)
    out2 = jax.block_until_ready(
        one_hot_concat_sonet(s2, a2, w1, b1, w2, b2, A,
                             block_rows=64, chunk_rows=32))
    ref2 = _reference(s2, a2, w1, b1, w2, b2, A)
    assert out2.shape == (T2, O)
    assert jnp.allclose(out2, ref2, atol=1e-5, rtol=1e-5)

    # 3) Default-config case: T = 600 (exercises the >=2-grid-step clamp for
    #    megacore sharding plus a partial chunk inside the last block).
    T3 = 600
    ks3, ka3 = jax.random.split(ka)
    s3 = jax.random.normal(ks3, (T3, S), dtype=jnp.float32)
    a3 = jax.random.randint(ka3, (T3, 1), 0, A, dtype=jnp.int32)
    out3 = jax.block_until_ready(one_hot_concat_sonet(s3, a3, w1, b1, w2, b2, A))
    ref3 = _reference(s3, a3, w1, b1, w2, b2, A)
    assert out3.shape == (T3, O)
    assert jnp.allclose(out3, ref3, atol=1e-5, rtol=1e-5)

    print("KERNEL_OK")
</pallas_src>

<mosaic_0001>
module attributes {stable_mosaic.version = 11 : i64} {
  func.func @kernel(%arg0: i32, %arg1: memref<8x16xf32, #tpu.memory_space<vmem>>, %arg2: memref<8x1xi8, #tpu.memory_space<vmem>>, %arg3: memref<16x32xf32, #tpu.memory_space<vmem>>, %arg4: memref<4x32xf32, #tpu.memory_space<vmem>>, %arg5: memref<1x32xf32, #tpu.memory_space<vmem>>, %arg6: memref<32x8xf32, #tpu.memory_space<vmem>>, %arg7: memref<1x8xf32, #tpu.memory_space<vmem>>, %arg8: memref<8x8xf32, #tpu.memory_space<vmem>>) attributes {dimension_semantics = [#tpu.dimension_semantics<parallel>], iteration_bounds = array<i64: 1>, scalar_prefetch = 0 : i64, scratch_operands = 0 : i64, tpu.core_type = #tpu.core_type<tc>, window_params = [{transform_indices = @transform_0, window_bounds = array<i64: 8, 16>}, {transform_indices = @transform_1, window_bounds = array<i64: 8, 1>}, {pipeline_mode = #tpu.pipeline_mode<synchronous>, transform_indices = @transform_2, window_bounds = array<i64: 16, 32>}, {pipeline_mode = #tpu.pipeline_mode<synchronous>, transform_indices = @transform_3, window_bounds = array<i64: 4, 32>}, {pipeline_mode = #tpu.pipeline_mode<synchronous>, transform_indices = @transform_4, window_bounds = array<i64: 1, 32>}, {pipeline_mode = #tpu.pipeline_mode<synchronous>, transform_indices = @transform_5, window_bounds = array<i64: 32, 8>}, {pipeline_mode = #tpu.pipeline_mode<synchronous>, transform_indices = @transform_6, window_bounds = array<i64: 1, 8>}, {transform_indices = @transform_7, window_bounds = array<i64: 8, 8>}]} {
    %c0 = arith.constant 0 : index
    %c0_0 = arith.constant 0 : index
    %0 = vector.load %arg3[%c0, %c0_0] : memref<16x32xf32, #tpu.memory_space<vmem>>, vector<16x32xf32>
    %c0_1 = arith.constant 0 : index
    %c0_2 = arith.constant 0 : index
    %1 = vector.load %arg5[%c0_1, %c0_2] : memref<1x32xf32, #tpu.memory_space<vmem>>, vector<1x32xf32>
    %c0_3 = arith.constant 0 : index
    %c0_4 = arith.constant 0 : index
    %2 = vector.load %arg6[%c0_3, %c0_4] : memref<32x8xf32, #tpu.memory_space<vmem>>, vector<32x8xf32>
    %c0_5 = arith.constant 0 : index
    %c0_6 = arith.constant 0 : index
    %3 = vector.load %arg7[%c0_5, %c0_6] : memref<1x8xf32, #tpu.memory_space<vmem>>, vector<1x8xf32>
    %c0_7 = arith.constant 0 : index
    %c0_8 = arith.constant 0 : index
    %4 = vector.load %arg4[%c0_7, %c0_8] : memref<4x32xf32, #tpu.memory_space<vmem>>, vector<1x32xf32>
    %c1 = arith.constant 1 : index
    %c0_9 = arith.constant 0 : index
    %5 = vector.load %arg4[%c1, %c0_9] : memref<4x32xf32, #tpu.memory_space<vmem>>, vector<1x32xf32>
    %c2 = arith.constant 2 : index
    %c0_10 = arith.constant 0 : index
    %6 = vector.load %arg4[%c2, %c0_10] : memref<4x32xf32, #tpu.memory_space<vmem>>, vector<1x32xf32>
    %c3 = arith.constant 3 : index
    %c0_11 = arith.constant 0 : index
    %7 = vector.load %arg4[%c3, %c0_11] : memref<4x32xf32, #tpu.memory_space<vmem>>, vector<1x32xf32>
    %c0_12 = arith.constant 0 : index
    %c0_13 = arith.constant 0 : index
    %8 = vector.load %arg1[%c0_12, %c0_13] : memref<8x16xf32, #tpu.memory_space<vmem>>, vector<8x16xf32>
    %c0_14 = arith.constant 0 : index
    %c0_15 = arith.constant 0 : index
    %9 = vector.load %arg2[%c0_14, %c0_15] : memref<8x1xi8, #tpu.memory_space<vmem>>, vector<8x1xi8>
    %10 = arith.extsi %9 : vector<8x1xi8> to vector<8x1xi32>
    %cst = arith.constant dense<0.000000e+00> : vector<8x32xf32>
    %11 = tpu.matmul %8, %0, %cst {dimension_numbers = #tpu.dot_dimension_numbers<[1], [0], [0], [1], [0, 0, 1, 1], [], []>} : vector<8x16xf32>, vector<16x32xf32>, vector<8x32xf32> -> vector<8x32xf32>
    %c0_i32 = arith.constant 0 : i32
    %12 = vector.broadcast %c0_i32 : i32 to vector<8x1xi32>
    %13 = arith.cmpi eq, %10, %12 : vector<8x1xi32>
    %14 = vector.shape_cast %13 : vector<8x1xi1> to vector<8x1xi1>
    %15 = vector.broadcast %14 : vector<8x1xi1> to vector<8x32xi1>
    %16 = vector.shape_cast %4 : vector<1x32xf32> to vector<1x32xf32>
    %17 = vector.broadcast %16 : vector<1x32xf32> to vector<8x32xf32>
    %18 = vector.shape_cast %1 : vector<1x32xf32> to vector<1x32xf32>
    %19 = vector.broadcast %18 : vector<1x32xf32> to vector<8x32xf32>
    %20 = arith.select %15, %17, %19 : vector<8x32xi1>, vector<8x32xf32>
    %c1_i32 = arith.constant 1 : i32
    %21 = vector.broadcast %c1_i32 : i32 to vector<8x1xi32>
    %22 = arith.cmpi eq, %10, %21 : vector<8x1xi32>
    %23 = vector.shape_cast %22 : vector<8x1xi1> to vector<8x1xi1>
    %24 = vector.broadcast %23 : vector<8x1xi1> to vector<8x32xi1>
    %25 = vector.shape_cast %5 : vector<1x32xf32> to vector<1x32xf32>
    %26 = vector.broadcast %25 : vector<1x32xf32> to vector<8x32xf32>
    %27 = arith.select %24, %26, %20 : vector<8x32xi1>, vector<8x32xf32>
    %c2_i32 = arith.constant 2 : i32
    %28 = vector.broadcast %c2_i32 : i32 to vector<8x1xi32>
    %29 = arith.cmpi eq, %10, %28 : vector<8x1xi32>
    %30 = vector.shape_cast %29 : vector<8x1xi1> to vector<8x1xi1>
    %31 = vector.broadcast %30 : vector<8x1xi1> to vector<8x32xi1>
    %32 = vector.shape_cast %6 : vector<1x32xf32> to vector<1x32xf32>
    %33 = vector.broadcast %32 : vector<1x32xf32> to vector<8x32xf32>
    %34 = arith.select %31, %33, %27 : vector<8x32xi1>, vector<8x32xf32>
    %c3_i32 = arith.constant 3 : i32
    %35 = vector.broadcast %c3_i32 : i32 to vector<8x1xi32>
    %36 = arith.cmpi eq, %10, %35 : vector<8x1xi32>
    %37 = vector.shape_cast %36 : vector<8x1xi1> to vector<8x1xi1>
    %38 = vector.broadcast %37 : vector<8x1xi1> to vector<8x32xi1>
    %39 = vector.shape_cast %7 : vector<1x32xf32> to vector<1x32xf32>
    %40 = vector.broadcast %39 : vector<1x32xf32> to vector<8x32xf32>
    %41 = arith.select %38, %40, %34 : vector<8x32xi1>, vector<8x32xf32>
    %42 = arith.addf %11, %41 : vector<8x32xf32>
    %cst_16 = arith.constant 0.000000e+00 : f32
    %43 = vector.broadcast %cst_16 : f32 to vector<8x32xf32>
    %44 = arith.maximumf %42, %43 : vector<8x32xf32>
    %cst_17 = arith.constant dense<0.000000e+00> : vector<8x8xf32>
    %45 = tpu.matmul %44, %2, %cst_17 {dimension_numbers = #tpu.dot_dimension_numbers<[1], [0], [0], [1], [0, 0, 1, 1], [], []>} : vector<8x32xf32>, vector<32x8xf32>, vector<8x8xf32> -> vector<8x8xf32>
    %46 = vector.broadcast %3 : vector<1x8xf32> to vector<8x8xf32>
    %47 = arith.addf %45, %46 : vector<8x8xf32>
    %c0_18 = arith.constant 0 : index
    %c0_19 = arith.constant 0 : index
    %48 = vector.load %arg8[%c0_18, %c0_19] : memref<8x8xf32, #tpu.memory_space<vmem>>, vector<8x8xf32>
    tpu.vector_store %arg8[%c0_18, %c0_19], %47 {strides = array<i32>} : memref<8x8xf32, #tpu.memory_space<vmem>>, vector<8x8xf32>,
    return
  }
  func.func @transform_0(%arg0: i32) -> (i32, i32) {
    %c0_i32 = arith.constant 0 : i32
    %c0_i32_0 = arith.constant 0 : i32
    return %arg0, %c0_i32 : i32, i32
  }
  func.func @transform_1(%arg0: i32) -> (i32, i32) {
    %c0_i32 = arith.constant 0 : i32
    %c0_i32_0 = arith.constant 0 : i32
    return %arg0, %c0_i32 : i32, i32
  }
  func.func @transform_2(%arg0: i32) -> (i32, i32) {
    %c0_i32 = arith.constant 0 : i32
    %c0_i32_0 = arith.constant 0 : i32
    %c0_i32_1 = arith.constant 0 : i32
    return %c0_i32, %c0_i32_0 : i32, i32
  }
  func.func @transform_3(%arg0: i32) -> (i32, i32) {
    %c0_i32 = arith.constant 0 : i32
    %c0_i32_0 = arith.constant 0 : i32
    %c0_i32_1 = arith.constant 0 : i32
    return %c0_i32, %c0_i32_0 : i32, i32
  }
  func.func @transform_4(%arg0: i32) -> (i32, i32) {
    %c0_i32 = arith.constant 0 : i32
    %c0_i32_0 = arith.constant 0 : i32
    %c0_i32_1 = arith.constant 0 : i32
    return %c0_i32, %c0_i32_0 : i32, i32
  }
  func.func @transform_5(%arg0: i32) -> (i32, i32) {
    %c0_i32 = arith.constant 0 : i32
    %c0_i32_0 = arith.constant 0 : i32
    %c0_i32_1 = arith.constant 0 : i32
    return %c0_i32, %c0_i32_0 : i32, i32
  }
  func.func @transform_6(%arg0: i32) -> (i32, i32) {
    %c0_i32 = arith.constant 0 : i32
    %c0_i32_0 = arith.constant 0 : i32
    %c0_i32_1 = arith.constant 0 : i32
    return %c0_i32, %c0_i32_0 : i32, i32
  }
  func.func @transform_7(%arg0: i32) -> (i32, i32) {
    %c0_i32 = arith.constant 0 : i32
    %c0_i32_0 = arith.constant 0 : i32
    return %arg0, %c0_i32 : i32, i32
  }
}

</mosaic_0001>

<llo_original>
// kernel: tpu_custom_call.1
$region0: #{tpu_custom_call.1}
  #allocation0 [shape = 'u32[]', space=smem, size = 0x4, offset = 0x4, fixed_abs, tag = 'smem constant byte address 0x4 - core index']
  #allocation1 [shape = 'u32[72,128]{1,0:T(1,128)}', space=vmem, size = 0x9000, scoped, tag = 'internal scratch']
  %s0 = inlined_call_operand.vmem [shape: f32[8,16], index: 0, kind: input, shape index: {}]
  %s1 = inlined_call_operand.vmem [shape: s8[8,1], index: 1, kind: input, shape index: {}]
  %s2 = inlined_call_operand.vmem [shape: f32[16,32], index: 2, kind: input, shape index: {}]
  %s3 = inlined_call_operand.vmem [shape: f32[4,32], index: 3, kind: input, shape index: {}]
  %s4 = inlined_call_operand.vmem [shape: f32[1,32], index: 4, kind: input, shape index: {}]
  %s5 = inlined_call_operand.vmem [shape: f32[32,8], index: 5, kind: input, shape index: {}]
  %s6 = inlined_call_operand.vmem [shape: f32[1,8], index: 6, kind: input, shape index: {}]
  %s7 = inlined_call_operand.hbm [shape: f32[8,8], index: 7, kind: output, shape index: {}]
  %s8 = sld [smem:[#allocation0]]
  $region38: #{tpu_custom_call.1} parent=0
    _
  %s10 = ssub.s32 1, %s8
  %s11 = scalar_select 0, %s10, %s8
  $region1: #{tpu_custom_call.1} parent=0
    #allocation2 [shape = 'u8[4096]{0}', space=vmem, size = 0x1000, scoped, tag = 'output window, operand 0, single buffered']
    #allocation3 [shape = 's32[1]{0}', space=sflag, size = 0x4, scoped, tag = 'scoped memory for tpu_custom_call.1']
    %12 = vsyncpa [#allocation3], 0
    // Predicated region
    $region2: #{tpu_custom_call.1} parent=1 // pred_check
      _
    $region3: #{tpu_custom_call.1} parent=1 // pred_check_branch
      %14 = sbr.rel (0) target = $region5
    $region4: #{tpu_custom_call.1} parent=1 // pred_region
      _
    $region5: #{tpu_custom_call.1} parent=1 // pred_fallthru
      _
    // Predicated region
    $region6: #{tpu_custom_call.1} parent=1 // pred_check
      _
    $region7: #{tpu_custom_call.1} parent=1 // pred_check_branch
      %16 = sbr.rel (0) target = $region9
    $region8: #{tpu_custom_call.1} parent=1 // pred_region
      _
    $region9: #{tpu_custom_call.1} parent=1 // pred_fallthru
      _
    // Predicated region
    $region10: #{tpu_custom_call.1} parent=1 // pred_check
      _
    $region11: #{tpu_custom_call.1} parent=1 // pred_check_branch
      %18 = sbr.rel (0) target = $region13
    $region12: #{tpu_custom_call.1} parent=1 // pred_region
      _
    $region13: #{tpu_custom_call.1} parent=1 // pred_fallthru
      _
    // Predicated region
    $region14: #{tpu_custom_call.1} parent=1 // pred_check
      _
    $region15: #{tpu_custom_call.1} parent=1 // pred_check_branch
      %20 = sbr.rel (0) target = $region17
    $region16: #{tpu_custom_call.1} parent=1 // pred_region
      _
    $region17: #{tpu_custom_call.1} parent=1 // pred_fallthru
      _
    // Predicated region
    $region18: #{tpu_custom_call.1} parent=1 // pred_check
      _
    $region19: #{tpu_custom_call.1} parent=1 // pred_check_branch
      %22 = sbr.rel (0) target = $region21
    $region20: #{tpu_custom_call.1} parent=1 // pred_region
      _
    $region21: #{tpu_custom_call.1} parent=1 // pred_fallthru
      _
    // Predicated region
    $region22: #{tpu_custom_call.1} parent=1 // pred_check
      _
    $region23: #{tpu_custom_call.1} parent=1 // pred_check_branch
      %24 = sbr.rel (0) target = $region25
    $region24: #{tpu_custom_call.1} parent=1 // pred_region
      _
    $region25: #{tpu_custom_call.1} parent=1 // pred_fallthru
      _
    // Predicated region
    $region26: #{tpu_custom_call.1} parent=1 // pred_check
      _
    $region27: #{tpu_custom_call.1} parent=1 // pred_check_branch
      %26 = sbr.rel (0) target = $region29
    $region28: #{tpu_custom_call.1} parent=1 // pred_region
      _
    $region29: #{tpu_custom_call.1} parent=1 // pred_fallthru
      _
    %v27 = vld [vmem:[%s2] sm:$0xff]
    %v28 = vld [vmem:[%s2 + $0x8] sm:$0xff]
    %v29 = vld [vmem:[%s4] sm:$0x1]
    %v30 = vld [vmem:[%s5] sm:$0xff]
    %v31 = vld [vmem:[%s5 + $0x8] sm:$0xff]
    %v32 = vld [vmem:[%s5 + $0x10] sm:$0xff]
    %v33 = vld [vmem:[%s5 + $0x18] sm:$0xff]
    %v34 = vld [vmem:[%s6] sm:$0x1]
    %v35 = vld [vmem:[%s3] sm:$0x1]
    %v36 = vld [vmem:[%s3 + $0x1] sm:$0x1]
    %v37 = vld [vmem:[%s3 + $0x2] sm:$0x1]
    %v38 = vld [vmem:[%s3 + $0x3] sm:$0x1]
    %v39 = vld [vmem:[%s0] sm:$0xff]
    %v40 = vld [vmem:[%s1] sm:$0x3]
    %v41 = vunpack.c.0.s8 %v40
    %vm42 = vcmp.eq.s32.totalorder %v41, 0
    %v43 = vsel %vm42, 1, 0
    %44 = vset.pattern.permute.xlu0 0
    %45 = vperm.xlu0 %44, %v43
    %v46 = vpop.permute.xlu0 %45
    %vm47 = vcmp.eq.s32.totalorder %v46, 1
    %v48 = vperm.slane %v35, 0
    %v50 = vperm.slane %v29, 0
    %v52 = vsel %vm47, %v48, %v50
    %vm53 = vcmp.eq.s32.totalorder %v41, 1
    %v54 = vsel %vm53, 1, 0
    %55 = vset.pattern.permute.xlu0 0
    %56 = vperm.xlu0 %55, %v54
    %v57 = vpop.permute.xlu0 %56
    %vm58 = vcmp.eq.s32.totalorder %v57, 1
    %v59 = vperm.slane %v36, 0
    %v60 = vsel %vm58, %v59, %v52
    %vm61 = vcmp.eq.s32.totalorder %v41, 2
    %v62 = vsel %vm61, 1, 0
    %63 = vset.pattern.permute.xlu0 0
    %64 = vperm.xlu0 %63, %v62
    %v65 = vpop.permute.xlu0 %64
    %vm66 = vcmp.eq.s32.totalorder %v65, 1
    %v67 = vperm.slane %v37, 0
    %v68 = vsel %vm66, %v67, %v60
    %vm69 = vcmp.eq.s32.totalorder %v41, 3
    %v70 = vsel %vm69, 1, 0
    %71 = vset.pattern.permute.xlu0 0
    %72 = vperm.xlu0 %71, %v70
    %v73 = vpop.permute.xlu0 %72
    %vm74 = vcmp.eq.s32.totalorder %v73, 1
    %v75 = vperm.slane %v38, 0
    %v76 = vsel %vm74, %v75, %v68
    %vm77 = vcmask 130048
    %v79 = vsel %vm77, %v39, 0
    %81 = vmatpush.msra.mxu0 0.0
    %82 = vmatpush.msra.mxu0 0.0
    %83 = vmatpush.msra.mxu0 0.0
    %84 = vmatpush.msra.mxu0 0.0
    %85 = vmatpush.msra.mxu0 0.0
    %86 = vmatpush.msra.mxu0 0.0
    %87 = vmatpush.msra.mxu0 0.0
    %88 = vmatpush.msra.mxu0 0.0
    %89 = vmatpush.msra.mxu0 0.0
    %90 = vmatpush.msra.mxu0 0.0
    %91 = vmatpush.msra.mxu0 0.0
    %92 = vmatpush.msra.mxu0 0.0
    %93 = vmatpush.msra.mxu0 0.0
    %94 = vmatpush.msra.mxu0 0.0
    %95 = vmatpush.msra.mxu0 %v28
    %96 = vmatpush.msra.mxu0 %v27
    %97 = vmatmul.f32.gmra.mxu0 %v79
    %v98 = vpop.f32.mrf.mxu0
    %v99 = vadd.f32 %v76, %v98
    %100 = vdwg.mxu0
    %v101 = vmax.f32 %v99, 0.0
    %v103 = vperm.slane %v34, 0
    %vm105 = vcmask 261120
    %v107 = vsel %vm105, %v101, 0
    %109 = vmatpush.msra.mxu0 0.0
    %110 = vmatpush.msra.mxu0 0.0
    %111 = vmatpush.msra.mxu0 0.0
    %112 = vmatpush.msra.mxu0 0.0
    %113 = vmatpush.msra.mxu0 0.0
    %114 = vmatpush.msra.mxu0 0.0
    %115 = vmatpush.msra.mxu0 0.0
    %116 = vmatpush.msra.mxu0 0.0
    %117 = vmatpush.msra.mxu0 0.0
    %118 = vmatpush.msra.mxu0 0.0
    %119 = vmatpush.msra.mxu0 0.0
    %120 = vmatpush.msra.mxu0 0.0
    %121 = vmatpush.msra.mxu0 %v33
    %122 = vmatpush.msra.mxu0 %v32
    %123 = vmatpush.msra.mxu0 %v31
    %124 = vmatpush.msra.mxu0 %v30
    %125 = vmatmul.f32.gmra.mxu0 %v107
    %v126 = vpop.f32.mrf.mxu0
    %v127 = vadd.f32 %v103, %v126
    %128 = vdwg.mxu0
    %vm129 = vcmask 64512
    %130 = vst.msk [vmem:[#allocation2] sm:$0xff] %vm129, %v127
    // Predicated region
    $region30: #{tpu_custom_call.1} parent=1 // pred_check
      _
    $region31: #{tpu_custom_call.1} parent=1 // pred_check_branch
      %132 = sbr.rel (0) target = $region33
    $region32: #{tpu_custom_call.1} parent=1 // pred_region
      %134 = vsyncadd [#allocation3], 0
      %s136 = sshll.u32 [#allocation2], 4
      %s137 = int_to_ptr.vmem [resolvable:$true] %s136
      %s138 = sshll.u32 %s7, 4
      %s139 = int_to_ptr.hbm [resolvable:$true] %s138
      %141 = dma.vmem_to_hbm [thread:$0]  %s137, 128, %s139, [#allocation3]
    $region33: #{tpu_custom_call.1} parent=1 // pred_fallthru
      _
    // Predicated region
    $region34: #{tpu_custom_call.1} parent=1 // pred_check
      _
    $region35: #{tpu_custom_call.1} parent=1 // pred_check_branch
      %143 = sbr.rel (0) target = $region37
    $region36: #{tpu_custom_call.1} parent=1 // pred_region
      %145 = dma.done [#allocation3], 128
    $region37: #{tpu_custom_call.1} parent=1 // pred_fallthru
      _
    %146 = vsyncpa [#allocation3], 1

</llo_original>
